<compile_context>
chip_gen: v5e
topology: v5e:2x2
jax: 0.10.0
libtpu: 0.0.40
codegen_flags: <defaults>
</compile_context>

<pallas_src>
import functools

import jax
import jax.numpy as jnp
from jax.experimental import pallas as pl
from jax.experimental.pallas import tpu as pltpu

BATCH_SIZE = 5
HIDDEN_SIZE = 32
ITEM_RANGE = 20


def _rnn_fused_kernel(idx_ref, emb_ref, h0_ref, wi_ref, wh_ref, b_ref,
                      wo_ref, bo_ref, out_ref, h_ref):
    """Embedding gather + leaky_relu + fused single-step GRU + output Linear.

    idx_ref : (B, 1)   int32  token indices
    emb_ref : (V, H)   f32    embedding table (V = ITEM_RANGE)
    h0_ref  : (B, H)   f32    initial hidden state (aliased to h_ref output)
    wi_ref  : (H, 4H)  f32    lane blocks [Wi_r | Wi_z | Wi_n | 0], pre-transposed
    wh_ref  : (H, 4H)  f32    lane blocks [Wh_r | Wh_z | 0 | Wh_n], pre-transposed
    b_ref   : (1, 4H)  f32    [bi_r+bh_r | bi_z+bh_z | bi_n | bh_n]
    wo_ref  : (H, O)   f32    output Linear weight, pre-transposed
    bo_ref  : (1, O)   f32    output Linear bias
    out_ref : (B, O)   f32
    h_ref   : (B, H)   f32    new hidden state
    """
    B, H = h0_ref.shape
    V = emb_ref.shape[0]

    # --- embedding gather as a one-hot matmul (MXU; no separate XLA gather) ---
    idx = idx_ref[...]                                            # (B, 1) int32
    iota = jax.lax.broadcasted_iota(jnp.int32, (B, V), 1)          # (B, V)
    onehot = (idx == iota).astype(jnp.float32)                     # (B, V)
    x = jnp.dot(onehot, emb_ref[...],
                preferred_element_type=jnp.float32)                # (B, H)

    # F.leaky_relu(x, 0.01)
    x = jnp.where(x >= 0, x, 0.01 * x)

    h0 = h0_ref[...]

    # --- all gate pre-activations: two (B,H)x(H,4H) matmuls + one bias add ---
    g = (jnp.dot(x, wi_ref[...], preferred_element_type=jnp.float32)
         + jnp.dot(h0, wh_ref[...], preferred_element_type=jnp.float32)
         + b_ref[...])                                             # (B, 4H)

    # gate order [r, z, n]; n split into input-side and hidden-side halves
    r = jax.nn.sigmoid(g[:, 0:H])
    z = jax.nn.sigmoid(g[:, H:2 * H])
    n = jnp.tanh(g[:, 2 * H:3 * H] + r * g[:, 3 * H:4 * H])

    h_new = (1.0 - z) * n + z * h0

    out_ref[...] = (jnp.dot(h_new, wo_ref[...],
                            preferred_element_type=jnp.float32) + bo_ref[...])
    h_ref[...] = h_new


def _make_params(key, input_size=ITEM_RANGE, hidden_size=HIDDEN_SIZE):
    """Deterministic parameter init mirroring PyTorch shapes."""
    ks = jax.random.split(key, 8)
    H = hidden_size
    k = 1.0 / jnp.sqrt(jnp.float32(H))

    # nn.Embedding(input_size, hidden_size): N(0, 1)
    emb_table = jax.random.normal(ks[0], (input_size, H), jnp.float32)

    # nn.GRU weights: weight_ih_l0 (3H, H), weight_hh_l0 (3H, H), biases (3H,)
    w_ih = jax.random.uniform(ks[1], (3 * H, H), jnp.float32, -k, k)
    w_hh = jax.random.uniform(ks[2], (3 * H, H), jnp.float32, -k, k)
    b_ih = jax.random.uniform(ks[3], (3 * H,), jnp.float32, -k, k)
    b_hh = jax.random.uniform(ks[4], (3 * H,), jnp.float32, -k, k)

    # nn.Linear(hidden_size, ITEM_RANGE): weight (OUT, H), bias (OUT,)
    w_out = jax.random.uniform(ks[5], (ITEM_RANGE, H), jnp.float32, -k, k)
    b_out = jax.random.uniform(ks[6], (ITEM_RANGE,), jnp.float32, -k, k)

    return dict(emb_table=emb_table, w_ih=w_ih, w_hh=w_hh,
                b_ih=b_ih, b_hh=b_hh, w_out=w_out, b_out=b_out)


def prepare_params(params, hidden_size=HIDDEN_SIZE):
    """One-time layout bake: fuse + pre-transpose GRU / Linear weights.

    PyTorch GRU gate order is [r, z, n].  Output lane blocks (4H = 128):
      wi_big columns: [Wi_r^T | Wi_z^T | Wi_n^T | 0     ]
      wh_big columns: [Wh_r^T | Wh_z^T | 0      | Wh_n^T]
      b_all         : [bi_r+bh_r | bi_z+bh_z | bi_n | bh_n]
    """
    H = hidden_size
    wi = params["w_ih"].reshape(3, H, H).transpose(0, 2, 1)   # (3, H, H) W^T
    wh = params["w_hh"].reshape(3, H, H).transpose(0, 2, 1)
    bi = params["b_ih"].reshape(3, H)
    bh = params["b_hh"].reshape(3, H)

    zeros = jnp.zeros((H, H), jnp.float32)
    wi_big = jnp.concatenate([wi[0], wi[1], wi[2], zeros], axis=1)  # (H, 4H)
    wh_big = jnp.concatenate([wh[0], wh[1], zeros, wh[2]], axis=1)  # (H, 4H)
    b_all = jnp.concatenate(
        [bi[0] + bh[0], bi[1] + bh[1], bi[2], bh[2]], axis=0
    ).reshape(1, 4 * H)                                             # (1, 4H)

    wo = params["w_out"].T                                          # (H, OUT)
    bo = params["b_out"].reshape(1, -1)                             # (1, OUT)

    return dict(emb_table=params["emb_table"].astype(jnp.float32),
                wi_big=wi_big, wh_big=wh_big, b_all=b_all, wo=wo, bo=bo)


@functools.partial(jax.jit, static_argnames=("batch_size", "hidden_size"))
def rnn_forward(kparams, x, hidden_state=None,
                batch_size=BATCH_SIZE, hidden_size=HIDDEN_SIZE):
    """Pallas implementation of RNN.forward. Returns (out, h_s)."""
    H = hidden_size
    B = batch_size

    if hidden_state is None:
        h0 = jnp.zeros((B, H), jnp.float32)
    else:
        h0 = hidden_state.reshape(B, H).astype(jnp.float32)

    idx = x.reshape(B, 1).astype(jnp.int32)

    vmem = pl.BlockSpec(memory_space=pltpu.MemorySpace.VMEM)

    out, h_new = pl.pallas_call(
        _rnn_fused_kernel,
        out_shape=(
            jax.ShapeDtypeStruct((B, ITEM_RANGE), jnp.float32),
            jax.ShapeDtypeStruct((B, H), jnp.float32),
        ),
        in_specs=[vmem] * 8,
        out_specs=(vmem, vmem),
        # reuse h0's buffer for h_new (h0 is fully read before h_ref is written)
        input_output_aliases={2: 1},
    )(idx, kparams["emb_table"], h0, kparams["wi_big"], kparams["wh_big"],
      kparams["b_all"], kparams["wo"], kparams["bo"])

    # PyTorch GRU hidden output is (num_layers, batch, hidden)
    h_s = h_new.reshape(1, B, H)
    return out, h_s


if __name__ == "__main__":
    key = jax.random.PRNGKey(0)
    pkey, xkey = jax.random.split(key)

    params = _make_params(pkey)
    kparams = prepare_params(params)          # one-time weight layout bake

    # x: one token index per batch element (module flattens to (B, hidden))
    x = jax.random.randint(xkey, (BATCH_SIZE,), 0, ITEM_RANGE, dtype=jnp.int32)

    out, h_s = rnn_forward(kparams, x, hidden_state=None)
    jax.block_until_ready((out, h_s))

    assert out.shape == (BATCH_SIZE, ITEM_RANGE)
    assert h_s.shape == (1, BATCH_SIZE, HIDDEN_SIZE)
    print("KERNEL_OK")
</pallas_src>

<mosaic_0001>
module attributes {stable_mosaic.version = 11 : i64} {
  func.func @_rnn_fused_kernel(%arg0: memref<5x1xi32, #tpu.memory_space<vmem>>, %arg1: memref<20x32xf32, #tpu.memory_space<vmem>>, %arg2: memref<5x32xf32, #tpu.memory_space<vmem>>, %arg3: memref<32x128xf32, #tpu.memory_space<vmem>>, %arg4: memref<32x128xf32, #tpu.memory_space<vmem>>, %arg5: memref<1x128xf32, #tpu.memory_space<vmem>>, %arg6: memref<32x20xf32, #tpu.memory_space<vmem>>, %arg7: memref<1x20xf32, #tpu.memory_space<vmem>>, %arg8: memref<5x20xf32, #tpu.memory_space<vmem>>, %arg9: memref<5x32xf32, #tpu.memory_space<vmem>>) attributes {dimension_semantics = [], scalar_prefetch = 0 : i64, scratch_operands = 0 : i64, tpu.core_type = #tpu.core_type<tc>} {
    %c0 = arith.constant 0 : index
    %c0_0 = arith.constant 0 : index
    %0 = vector.load %arg0[%c0, %c0_0] : memref<5x1xi32, #tpu.memory_space<vmem>>, vector<5x1xi32>
    %1 = tpu.iota {dimensions = array<i32: 1>} : vector<5x20xi32>
    %2 = vector.broadcast %0 : vector<5x1xi32> to vector<5x20xi32>
    %3 = arith.cmpi eq, %2, %1 : vector<5x20xi32>
    %4 = arith.extui %3 : vector<5x20xi1> to vector<5x20xi32>
    %5 = arith.sitofp %4 : vector<5x20xi32> to vector<5x20xf32>
    %c0_1 = arith.constant 0 : index
    %c0_2 = arith.constant 0 : index
    %6 = vector.load %arg1[%c0_1, %c0_2] : memref<20x32xf32, #tpu.memory_space<vmem>>, vector<20x32xf32>
    %cst = arith.constant dense<0.000000e+00> : vector<5x32xf32>
    %7 = tpu.matmul %5, %6, %cst {dimension_numbers = #tpu.dot_dimension_numbers<[1], [0], [0], [1], [0, 0, 1, 1], [], []>} : vector<5x20xf32>, vector<20x32xf32>, vector<5x32xf32> -> vector<5x32xf32>
    %cst_3 = arith.constant 0.000000e+00 : f32
    %8 = vector.broadcast %cst_3 : f32 to vector<5x32xf32>
    %9 = arith.cmpf oge, %7, %8 : vector<5x32xf32>
    %cst_4 = arith.constant 0.00999999977 : f32
    %10 = vector.broadcast %cst_4 : f32 to vector<5x32xf32>
    %11 = arith.mulf %10, %7 : vector<5x32xf32>
    %12 = arith.select %9, %7, %11 : vector<5x32xi1>, vector<5x32xf32>
    %c0_5 = arith.constant 0 : index
    %c0_6 = arith.constant 0 : index
    %13 = vector.load %arg2[%c0_5, %c0_6] : memref<5x32xf32, #tpu.memory_space<vmem>>, vector<5x32xf32>
    %c0_7 = arith.constant 0 : index
    %c0_8 = arith.constant 0 : index
    %14 = vector.load %arg3[%c0_7, %c0_8] : memref<32x128xf32, #tpu.memory_space<vmem>>, vector<32x128xf32>
    %cst_9 = arith.constant dense<0.000000e+00> : vector<5x128xf32>
    %15 = tpu.matmul %12, %14, %cst_9 {dimension_numbers = #tpu.dot_dimension_numbers<[1], [0], [0], [1], [0, 0, 1, 1], [], []>} : vector<5x32xf32>, vector<32x128xf32>, vector<5x128xf32> -> vector<5x128xf32>
    %c0_10 = arith.constant 0 : index
    %c0_11 = arith.constant 0 : index
    %16 = vector.load %arg4[%c0_10, %c0_11] : memref<32x128xf32, #tpu.memory_space<vmem>>, vector<32x128xf32>
    %cst_12 = arith.constant dense<0.000000e+00> : vector<5x128xf32>
    %17 = tpu.matmul %13, %16, %cst_12 {dimension_numbers = #tpu.dot_dimension_numbers<[1], [0], [0], [1], [0, 0, 1, 1], [], []>} : vector<5x32xf32>, vector<32x128xf32>, vector<5x128xf32> -> vector<5x128xf32>
    %18 = arith.addf %15, %17 : vector<5x128xf32>
    %c0_13 = arith.constant 0 : index
    %c0_14 = arith.constant 0 : index
    %19 = vector.load %arg5[%c0_13, %c0_14] : memref<1x128xf32, #tpu.memory_space<vmem>>, vector<1x128xf32>
    %20 = vector.broadcast %19 : vector<1x128xf32> to vector<5x128xf32>
    %21 = arith.addf %18, %20 : vector<5x128xf32>
    %22 = vector.extract_strided_slice %21 {offsets = [0, 0], sizes = [5, 32], strides = [1, 1]} : vector<5x128xf32> to vector<5x32xf32>
    %23 = arith.negf %22 : vector<5x32xf32>
    %24 = math.exp %23 : vector<5x32xf32>
    %cst_15 = arith.constant 1.000000e+00 : f32
    %25 = vector.broadcast %cst_15 : f32 to vector<5x32xf32>
    %26 = arith.addf %25, %24 : vector<5x32xf32>
    %27 = arith.divf %25, %26 : vector<5x32xf32>
    %28 = vector.extract_strided_slice %21 {offsets = [0, 32], sizes = [5, 32], strides = [1, 1]} : vector<5x128xf32> to vector<5x32xf32>
    %29 = arith.negf %28 : vector<5x32xf32>
    %30 = math.exp %29 : vector<5x32xf32>
    %cst_16 = arith.constant 1.000000e+00 : f32
    %31 = vector.broadcast %cst_16 : f32 to vector<5x32xf32>
    %32 = arith.addf %31, %30 : vector<5x32xf32>
    %33 = arith.divf %31, %32 : vector<5x32xf32>
    %34 = vector.extract_strided_slice %21 {offsets = [0, 64], sizes = [5, 32], strides = [1, 1]} : vector<5x128xf32> to vector<5x32xf32>
    %35 = vector.extract_strided_slice %21 {offsets = [0, 96], sizes = [5, 32], strides = [1, 1]} : vector<5x128xf32> to vector<5x32xf32>
    %36 = arith.mulf %27, %35 : vector<5x32xf32>
    %37 = arith.addf %34, %36 : vector<5x32xf32>
    %38 = math.tanh %37 : vector<5x32xf32>
    %cst_17 = arith.constant 1.000000e+00 : f32
    %39 = vector.broadcast %cst_17 : f32 to vector<5x32xf32>
    %40 = arith.subf %39, %33 : vector<5x32xf32>
    %41 = arith.mulf %40, %38 : vector<5x32xf32>
    %42 = arith.mulf %33, %13 : vector<5x32xf32>
    %43 = arith.addf %41, %42 : vector<5x32xf32>
    %c0_18 = arith.constant 0 : index
    %c0_19 = arith.constant 0 : index
    %44 = vector.load %arg6[%c0_18, %c0_19] : memref<32x20xf32, #tpu.memory_space<vmem>>, vector<32x20xf32>
    %cst_20 = arith.constant dense<0.000000e+00> : vector<5x20xf32>
    %45 = tpu.matmul %43, %44, %cst_20 {dimension_numbers = #tpu.dot_dimension_numbers<[1], [0], [0], [1], [0, 0, 1, 1], [], []>} : vector<5x32xf32>, vector<32x20xf32>, vector<5x20xf32> -> vector<5x20xf32>
    %c0_21 = arith.constant 0 : index
    %c0_22 = arith.constant 0 : index
    %46 = vector.load %arg7[%c0_21, %c0_22] : memref<1x20xf32, #tpu.memory_space<vmem>>, vector<1x20xf32>
    %47 = vector.broadcast %46 : vector<1x20xf32> to vector<5x20xf32>
    %48 = arith.addf %45, %47 : vector<5x20xf32>
    %c0_23 = arith.constant 0 : index
    %c0_24 = arith.constant 0 : index
    %49 = vector.load %arg8[%c0_23, %c0_24] : memref<5x20xf32, #tpu.memory_space<vmem>>, vector<5x20xf32>
    tpu.vector_store %arg8[%c0_23, %c0_24], %48 {strides = array<i32>} : memref<5x20xf32, #tpu.memory_space<vmem>>, vector<5x20xf32>,
    %c0_25 = arith.constant 0 : index
    %c0_26 = arith.constant 0 : index
    %50 = vector.load %arg9[%c0_25, %c0_26] : memref<5x32xf32, #tpu.memory_space<vmem>>, vector<5x32xf32>
    tpu.vector_store %arg9[%c0_25, %c0_26], %43 {strides = array<i32>} : memref<5x32xf32, #tpu.memory_space<vmem>>, vector<5x32xf32>,
    return
  }
}

</mosaic_0001>

<llo_original>
// kernel: rnn_forward.1
$region0: #{rnn_forward.1}
  #allocation0 [shape = 'u32[]', space=smem, size = 0x4, offset = 0x4, fixed_abs, tag = 'smem constant byte address 0x4 - core index']
  #allocation1 [shape = 'u32[72,128]{1,0:T(1,128)}', space=vmem, size = 0x9000, scoped, tag = 'internal scratch']
  %s0 = inlined_call_operand.vmem [shape: s32[5,1], index: 0, kind: input, shape index: {}]
  %s1 = inlined_call_operand.hbm [shape: f32[20,32], index: 1, kind: input, shape index: {}]
  %s2 = inlined_call_operand.vmem [shape: f32[5,32], index: 2, kind: input, shape index: {}, may-alias: {2,9}]
  %s3 = inlined_call_operand.vmem [shape: f32[32,128], index: 3, kind: input, shape index: {}]
  %s4 = inlined_call_operand.vmem [shape: f32[32,128], index: 4, kind: input, shape index: {}]
  %s5 = inlined_call_operand.vmem [shape: f32[1,128], index: 5, kind: input, shape index: {}]
  %s6 = inlined_call_operand.vmem [shape: f32[32,20], index: 6, kind: input, shape index: {}]
  %s7 = inlined_call_operand.vmem [shape: f32[1,20], index: 7, kind: input, shape index: {}]
  %s8 = inlined_call_operand.hbm [shape: f32[5,20], index: 8, kind: output, shape index: {0}]
  %s9 = inlined_call_operand.vmem [shape: f32[5,32], index: 9, kind: output, shape index: {1}, may-alias: {2,9}]
  %10 = xla_tuple %s8, %s9
  %s11 = sld [smem:[#allocation0]]
  $region54: #{rnn_forward.1} parent=0
    _
  %s13 = ssub.s32 1, %s11
  %s14 = scalar_select 0, %s13, %s11
  $region1: #{rnn_forward.1} parent=0
    #allocation2 [shape = 'u8[12288]{0}', space=vmem, size = 0x3000, scoped, tag = 'input window, operand 1, single buffered']
    #allocation3 [shape = 's32[1]{0}', space=sflag, size = 0x4, scoped, tag = 'scoped memory for rnn_forward.1']
    #allocation4 [shape = 's32[1]{0}', space=sflag, size = 0x4, scoped, tag = 'scoped memory for rnn_forward.1']
    #allocation5 [shape = 'u8[4096]{0}', space=vmem, size = 0x1000, scoped, tag = 'output window, operand 0, single buffered']
    %15 = vsyncpa [#allocation3], 0
    %16 = vsyncpa [#allocation4], 0
    // Predicated region
    $region2: #{rnn_forward.1} parent=1 // pred_check
      _
    $region3: #{rnn_forward.1} parent=1 // pred_check_branch
      %18 = sbr.rel (0) target = $region5
    $region4: #{rnn_forward.1} parent=1 // pred_region
      _
    $region5: #{rnn_forward.1} parent=1 // pred_fallthru
      _
    // Predicated region
    $region6: #{rnn_forward.1} parent=1 // pred_check
      _
    $region7: #{rnn_forward.1} parent=1 // pred_check_branch
      %20 = sbr.rel (0) target = $region9
    $region8: #{rnn_forward.1} parent=1 // pred_region
      %22 = vsyncadd [#allocation3], 0
      %s23 = sshll.u32 %s1, 4
      %s24 = int_to_ptr.hbm [resolvable:$true] %s23
      %s25 = sshll.u32 [#allocation2], 4
      %s26 = int_to_ptr.vmem [resolvable:$true] %s25
      %31 = dma.hbm_to_vmem [thread:$0]  %s24, 384, %s26, [#allocation3], 128, 128, 8
    $region9: #{rnn_forward.1} parent=1 // pred_fallthru
      _
    // Predicated region
    $region10: #{rnn_forward.1} parent=1 // pred_check
      _
    $region11: #{rnn_forward.1} parent=1 // pred_check_branch
      %33 = sbr.rel (0) target = $region13
    $region12: #{rnn_forward.1} parent=1 // pred_region
      _
    $region13: #{rnn_forward.1} parent=1 // pred_fallthru
      _
    // Predicated region
    $region14: #{rnn_forward.1} parent=1 // pred_check
      _
    $region15: #{rnn_forward.1} parent=1 // pred_check_branch
      %35 = sbr.rel (0) target = $region17
    $region16: #{rnn_forward.1} parent=1 // pred_region
      _
    $region17: #{rnn_forward.1} parent=1 // pred_fallthru
      _
    // Predicated region
    $region18: #{rnn_forward.1} parent=1 // pred_check
      _
    $region19: #{rnn_forward.1} parent=1 // pred_check_branch
      %37 = sbr.rel (0) target = $region21
    $region20: #{rnn_forward.1} parent=1 // pred_region
      _
    $region21: #{rnn_forward.1} parent=1 // pred_fallthru
      _
    // Predicated region
    $region22: #{rnn_forward.1} parent=1 // pred_check
      _
    $region23: #{rnn_forward.1} parent=1 // pred_check_branch
      %39 = sbr.rel (0) target = $region25
    $region24: #{rnn_forward.1} parent=1 // pred_region
      _
    $region25: #{rnn_forward.1} parent=1 // pred_fallthru
      _
    // Predicated region
    $region26: #{rnn_forward.1} parent=1 // pred_check
      _
    $region27: #{rnn_forward.1} parent=1 // pred_check_branch
      %41 = sbr.rel (0) target = $region29
    $region28: #{rnn_forward.1} parent=1 // pred_region
      _
    $region29: #{rnn_forward.1} parent=1 // pred_fallthru
      _
    // Predicated region
    $region30: #{rnn_forward.1} parent=1 // pred_check
      _
    $region31: #{rnn_forward.1} parent=1 // pred_check_branch
      %43 = sbr.rel (0) target = $region33
    $region32: #{rnn_forward.1} parent=1 // pred_region
      _
    $region33: #{rnn_forward.1} parent=1 // pred_fallthru
      _
    // Predicated region
    $region34: #{rnn_forward.1} parent=1 // pred_check
      _
    $region35: #{rnn_forward.1} parent=1 // pred_check_branch
      %45 = sbr.rel (0) target = $region37
    $region36: #{rnn_forward.1} parent=1 // pred_region
      %47 = dma.done [#allocation3], 384
    $region37: #{rnn_forward.1} parent=1 // pred_fallthru
      _
    %v48 = vld [vmem:[%s0] sm:$0x1f]
    %v49 = vlaneseq
    %v50 = vand.u32 %v49, 127
    %51 = vset.pattern.permute.xlu0 0
    %52 = vperm.xlu0 %51, %v48
    %v53 = vpop.permute.xlu0 %52
    %vm54 = vcmp.eq.s32.totalorder %v53, %v50
    %v55 = vsel %vm54, 1, 0
    %v56 = vcvt.s32.f32 %v55
    %v57 = vld [vmem:[#allocation2] sm:$0xff]
    %v58 = vld [vmem:[#allocation2 + $0x8] sm:$0xff]
    %v59 = vld [vmem:[#allocation2 + $0x10] sm:$0xf]
    %vm60 = vcmask 162816
    %v62 = vsel %vm60, %v56, 0
    %vm64 = vcmask 1043456
    %v66 = vsel %vm64, %v59, 0
    %68 = vmatpush.msra.mxu0 0.0
    %69 = vmatpush.msra.mxu0 0.0
    %70 = vmatpush.msra.mxu0 0.0
    %71 = vmatpush.msra.mxu0 0.0
    %72 = vmatpush.msra.mxu0 0.0
    %73 = vmatpush.msra.mxu0 0.0
    %74 = vmatpush.msra.mxu0 0.0
    %75 = vmatpush.msra.mxu0 0.0
    %76 = vmatpush.msra.mxu0 0.0
    %77 = vmatpush.msra.mxu0 0.0
    %78 = vmatpush.msra.mxu0 0.0
    %79 = vmatpush.msra.mxu0 0.0
    %80 = vmatpush.msra.mxu0 0.0
    %81 = vmatpush.msra.mxu0 %v66
    %82 = vmatpush.msra.mxu0 %v58
    %83 = vmatpush.msra.mxu0 %v57
    %84 = vmatmul.f32.gmra.mxu0 %v62
    %v85 = vpop.f32.mrf.mxu0
    %v86 = vadd.f32 0.0, %v85
    %87 = vdwg.mxu0
    %vm88 = vcmp.ge.f32.partialorder %v86, 0.0
    %v89 = vmul.f32 %v86, 0.01
    %v90 = vsel %vm88, %v86, %v89
    %v91 = vld [vmem:[%s2] sm:$0x1f]
    %v92 = vld [vmem:[%s3] sm:$0xff]
    %v93 = vld [vmem:[%s3 + $0x8] sm:$0xff]
    %v94 = vld [vmem:[%s3 + $0x10] sm:$0xff]
    %v95 = vld [vmem:[%s3 + $0x18] sm:$0xff]
    %v96 = vld [vmem:[%s4] sm:$0xff]
    %v97 = vld [vmem:[%s4 + $0x8] sm:$0xff]
    %v98 = vld [vmem:[%s4 + $0x10] sm:$0xff]
    %v99 = vld [vmem:[%s4 + $0x18] sm:$0xff]
    %vm100 = vcmask 261120
    %v102 = vsel %vm100, %v91, 0
    %104 = vmatpush.msra.mxu0 0.0
    %105 = vmatpush.msra.mxu0 0.0
    %106 = vmatpush.msra.mxu0 0.0
    %107 = vmatpush.msra.mxu0 0.0
    %108 = vmatpush.msra.mxu0 0.0
    %109 = vmatpush.msra.mxu0 0.0
    %110 = vmatpush.msra.mxu0 0.0
    %111 = vmatpush.msra.mxu0 0.0
    %112 = vmatpush.msra.mxu0 0.0
    %113 = vmatpush.msra.mxu0 0.0
    %114 = vmatpush.msra.mxu0 0.0
    %115 = vmatpush.msra.mxu0 0.0
    %116 = vmatpush.msra.mxu0 %v99
    %117 = vmatpush.msra.mxu0 %v98
    %118 = vmatpush.msra.mxu0 %v97
    %119 = vmatpush.msra.mxu0 %v96
    %120 = vmatmul.f32.gmra.mxu0 %v102
    %v121 = vpop.f32.mrf.mxu0
    %v122 = vadd.f32 0.0, %v121
    %123 = vdwg.mxu0
    %v125 = vsel %vm100, %v90, 0
    %127 = vmatpush.msra.mxu0 0.0
    %128 = vmatpush.msra.mxu0 0.0
    %129 = vmatpush.msra.mxu0 0.0
    %130 = vmatpush.msra.mxu0 0.0
    %131 = vmatpush.msra.mxu0 0.0
    %132 = vmatpush.msra.mxu0 0.0
    %133 = vmatpush.msra.mxu0 0.0
    %134 = vmatpush.msra.mxu0 0.0
    %135 = vmatpush.msra.mxu0 0.0
    %136 = vmatpush.msra.mxu0 0.0
    %137 = vmatpush.msra.mxu0 0.0
    %138 = vmatpush.msra.mxu0 0.0
    %139 = vmatpush.msra.mxu0 %v95
    %140 = vmatpush.msra.mxu0 %v94
    %141 = vmatpush.msra.mxu0 %v93
    %142 = vmatpush.msra.mxu0 %v92
    %143 = vmatmul.f32.gmra.mxu0 %v125
    %v144 = vpop.f32.mrf.mxu0
    %v145 = vadd.f32 %v122, %v144
    %146 = vdwg.mxu0
    %v147 = vld [vmem:[%s5] sm:$0x1]
    %v149 = vperm.slane %v147, 0
    %v151 = vadd.f32 %v145, %v149
    %v152 = vxor.u32 %v151, 2147483648
    %v153 = vmul.f32 %v152, 1.442695
    %v154 = vpow.pop %v153
    %v155 = vadd.f32 %v154, 1.0
    %v156 = vrcp.pop %v155
    %v157 = vmul.f32 %v155, %v156
    %v158 = vsub.f32 1.0, %v157
    %v159 = vmul.f32 %v156, %v158
    %v160 = vadd.f32 %v156, %v159
    %vm161 = vweird.f32 %v155
    %vm162 = vweird.f32 %v156
    %vm163 = vmor %vm161, %vm162
    %v164 = vsel %vm163, %v156, %v160
    %v165 = vand.u32 2147483647, %v155
    %vm166 = vcmp.eq.f32.partialorder %v165, 8.507059e+37
    %v167 = vand.u32 %v155, 2147483648
    %v168 = vor.u32 1.1754944e-38, %v167
    %v169 = vsel %vm166, %v168, %v164
    %v170 = vmul.f32 1.0, %v169
    %172 = vrot.lane.b32.xlu0 %v151, 32
    %v173 = vpop.permute.xlu0 %172
    %v175 = vmul.f32 %v170, %v173
    %177 = vrot.lane.b32.xlu0 %v175, 64
    %v178 = vpop.permute.xlu0 %177
    %v180 = vadd.f32 %v151, %v178
    %v181 = vtanh.pop %v180
    %v182 = vsub.f32 1.0, %v170
    %184 = vrot.lane.b32.xlu0 %v181, 96
    %v185 = vpop.permute.xlu0 %184
    %v187 = vmul.f32 %v182, %v185
    %188 = vrot.lane.b32.xlu0 %v91, 32
    %v189 = vpop.permute.xlu0 %188
    %v191 = vmul.f32 %v170, %v189
    %v192 = vadd.f32 %v187, %v191
    %v193 = vld [vmem:[%s6] sm:$0xff]
    %v194 = vld [vmem:[%s6 + $0x8] sm:$0xff]
    %v195 = vld [vmem:[%s6 + $0x10] sm:$0xff]
    %v196 = vld [vmem:[%s6 + $0x18] sm:$0xff]
    %v197 = vld [vmem:[%s7] sm:$0x1]
    %v199 = vperm.slane %v197, 0
    %202 = vrot.lane.b32.xlu0 %v192, 96
    %v203 = vpop.permute.xlu0 %202
    %v204 = vsel %vm100, %v203, 0
    %206 = vmatpush.msra.mxu0 0.0
    %207 = vmatpush.msra.mxu0 0.0
    %208 = vmatpush.msra.mxu0 0.0
    %209 = vmatpush.msra.mxu0 0.0
    %210 = vmatpush.msra.mxu0 0.0
    %211 = vmatpush.msra.mxu0 0.0
    %212 = vmatpush.msra.mxu0 0.0
    %213 = vmatpush.msra.mxu0 0.0
    %214 = vmatpush.msra.mxu0 0.0
    %215 = vmatpush.msra.mxu0 0.0
    %216 = vmatpush.msra.mxu0 0.0
    %217 = vmatpush.msra.mxu0 0.0
    %218 = vmatpush.msra.mxu0 %v196
    %219 = vmatpush.msra.mxu0 %v195
    %220 = vmatpush.msra.mxu0 %v194
    %221 = vmatpush.msra.mxu0 %v193
    %222 = vmatmul.f32.gmra.mxu0 %v204
    %v223 = vpop.f32.mrf.mxu0
    %v224 = vadd.f32 %v199, %v223
    %225 = vdwg.mxu0
    %vm226 = vcmask 159744
    %227 = vst.msk [vmem:[#allocation5] sm:$0x1f] %vm226, %v224
    %vm229 = vcmask 258048
    %230 = vst.msk [vmem:[%s9] sm:$0x1f] %vm229, %v203
    // Predicated region
    $region38: #{rnn_forward.1} parent=1 // pred_check
      _
    $region39: #{rnn_forward.1} parent=1 // pred_check_branch
      %232 = sbr.rel (0) target = $region41
    $region40: #{rnn_forward.1} parent=1 // pred_region
      %234 = vsyncadd [#allocation4], 0
      %s236 = sshll.u32 [#allocation5], 4
      %s237 = int_to_ptr.vmem [resolvable:$true] %s236
      %s238 = sshll.u32 %s8, 4
      %s239 = int_to_ptr.hbm [resolvable:$true] %s238
      %241 = dma.vmem_to_hbm [thread:$0]  %s237, 128, %s239, [#allocation4]
    $region41: #{rnn_forward.1} parent=1 // pred_fallthru
      _
    // Predicated region
    $region42: #{rnn_forward.1} parent=1 // pred_check
      _
    $region43: #{rnn_forward.1} parent=1 // pred_check_branch
      %243 = sbr.rel (0) target = $region45
    $region44: #{rnn_forward.1} parent=1 // pred_region
      _
    $region45: #{rnn_forward.1} parent=1 // pred_fallthru
      _
    // Predicated region
    $region46: #{rnn_forward.1} parent=1 // pred_check
      _
    $region47: #{rnn_forward.1} parent=1 // pred_check_branch
      %245 = sbr.rel (0) target = $region49
    $region48: #{rnn_forward.1} parent=1 // pred_region
      %247 = dma.done [#allocation4], 128
    $region49: #{rnn_forward.1} parent=1 // pred_fallthru
      _
    // Predicated region
    $region50: #{rnn_forward.1} parent=1 // pred_check
      _
    $region51: #{rnn_forward.1} parent=1 // pred_check_branch
      %249 = sbr.rel (0) target = $region53
    $region52: #{rnn_forward.1} parent=1 // pred_region
      _
    $region53: #{rnn_forward.1} parent=1 // pred_fallthru
      _
    %250 = vsyncpa [#allocation3], 1
    %251 = vsyncpa [#allocation4], 1

</llo_original>
